<compile_context>
chip_gen: v7x
topology: tpu7x:2x2x1
jax: 0.10.0
libtpu: 0.0.40
codegen_flags: <defaults>
</compile_context>

<pallas_src>
import functools

import jax
import jax.numpy as jnp
from jax.experimental import pallas as pl
from jax.experimental.pallas import tpu as pltpu


def _gated_attn_kernel(x_ref, wab_ref, bab_ref, wc_ref, bc_ref, out_ref, *,
                       vpu_proj: bool):
    # Cast x tile to bf16 in-kernel (VPU, overlapped with MXU) so the single
    # HBM pass over x stays f32 and the MXU still gets bf16 operands.
    xb = x_ref[...].astype(jnp.bfloat16)

    # One fused branch matmul: [tile_n, L] x [L, 2D], bf16 operands, f32 acc.
    h = jnp.dot(xb, wab_ref[...],
                preferred_element_type=jnp.float32) + bab_ref[...]
    d = wab_ref.shape[1] // 2
    a = jnp.tanh(h[:, :d])           # attention_a branch
    b = jax.nn.sigmoid(h[:, d:])     # attention_b branch
    ab = a * b

    if vpu_proj:
        # n_classes == 1: wc_ref is a [1, D] row.  VPU multiply + XLU lane
        # reduce instead of a 1-lane-wide MXU matmul.
        A = jnp.sum(ab * wc_ref[...], axis=-1, keepdims=True) + bc_ref[...]
    else:
        A = jnp.dot(ab.astype(jnp.bfloat16), wc_ref[...],
                    preferred_element_type=jnp.float32) + bc_ref[...]

    out_ref[...] = A.astype(out_ref.dtype)


def _round_up(x, m):
    return ((x + m - 1) // m) * m


def attn_net_gated(x, wa, ba, wb, bb, wc, bc, *, tile_n=512):
    """x: [N, L]; wa/wb: [L, D]; ba/bb: [1, D]; wc: [D, C]; bc: [1, C].

    Returns (A [N, C], x) exactly like the PyTorch module's forward.
    """
    N, L = x.shape
    D = wa.shape[1]
    C = wc.shape[1]

    # Fuse the two branch weights into one [L, 2D] bf16 matmul operand.
    wab = jnp.concatenate([wa, wb], axis=1).astype(jnp.bfloat16)   # [L, 2D]
    bab = jnp.concatenate([ba, bb], axis=1).astype(jnp.float32)    # [1, 2D]

    vpu_proj = (C == 1)
    if vpu_proj:
        wc_in = wc.T.astype(jnp.float32)      # [1, D] row for VPU/XLU path
    else:
        wc_in = wc.astype(jnp.bfloat16)       # [D, C] bf16 MXU operand
    bc_in = bc.astype(jnp.float32)

    # Row tiling: big tiles fill the MXU and amortize per-grid-step overhead;
    # no padding of x — the final partial tile is handled by Pallas (OOB input
    # rows never affect valid rows, OOB output rows are masked on writeback).
    tile = _round_up(min(tile_n, _round_up(N, 8)), 8)
    grid = (pl.cdiv(N, tile),)

    # VMEM budget: double-buffered f32 x/out tiles + resident weights + slack.
    itemsize_wc = jnp.dtype(wc_in.dtype).itemsize
    vmem_bytes = (2 * tile * L * 4 + 2 * tile * C * 4
                  + 2 * (wab.size * 2 + bab.size * 4
                         + wc_in.size * itemsize_wc + bc_in.size * 4))
    vmem_limit = int(min(vmem_bytes + (8 << 20), 64 << 20))

    cost = pl.CostEstimate(
        flops=2 * N * L * (2 * D) + 2 * N * D * C,
        transcendentals=2 * N * D,
        bytes_accessed=(x.size * 4 + wab.size * 2 + bab.size * 4
                        + wc_in.size * itemsize_wc + bc_in.size * 4
                        + N * C * 4))

    kernel = functools.partial(_gated_attn_kernel, vpu_proj=vpu_proj)

    A = pl.pallas_call(
        kernel,
        out_shape=jax.ShapeDtypeStruct((N, C), jnp.float32),
        grid_spec=pl.GridSpec(
            grid=grid,
            in_specs=[
                pl.BlockSpec((tile, L), lambda i: (i, 0)),     # x tile (streamed)
                pl.BlockSpec((L, 2 * D), lambda i: (0, 0)),    # fused Wa|Wb (resident)
                pl.BlockSpec((1, 2 * D), lambda i: (0, 0)),    # fused ba|bb
                pl.BlockSpec(wc_in.shape, lambda i: (0, 0)),   # Wc (row or matrix)
                pl.BlockSpec((1, C), lambda i: (0, 0)),        # bc
            ],
            out_specs=pl.BlockSpec((tile, C), lambda i: (i, 0)),
        ),
        compiler_params=pltpu.CompilerParams(
            dimension_semantics=("parallel",),
            vmem_limit_bytes=vmem_limit),
        cost_estimate=cost,
    )(x, wab, bab, wc_in, bc_in)

    return A, x


def _reference(x, wa, ba, wb, bb, wc, bc):
    a = jnp.tanh(x @ wa + ba)
    b = jax.nn.sigmoid(x @ wb + bb)
    return (a * b) @ wc + bc


if __name__ == "__main__":
    # Small shapes consistent with the module (L=input dim, D=hidden, C=classes).
    # N=500 with tile_n=256 exercises both the multi-step grid and the partial
    # final tile (244 valid rows) path.
    N, L, D, C = 500, 128, 128, 1

    key = jax.random.PRNGKey(0)
    kx, ka, kba, kb, kbb, kc, kbc = jax.random.split(key, 7)

    x = jax.random.normal(kx, (N, L), dtype=jnp.float32)
    # Linear weights stored pre-transposed as [in, out].
    wa = jax.random.normal(ka, (L, D), dtype=jnp.float32) * 0.05
    ba = jax.random.normal(kba, (1, D), dtype=jnp.float32) * 0.05
    wb = jax.random.normal(kb, (L, D), dtype=jnp.float32) * 0.05
    bb = jax.random.normal(kbb, (1, D), dtype=jnp.float32) * 0.05
    wc = jax.random.normal(kc, (D, C), dtype=jnp.float32) * 0.05
    bc = jax.random.normal(kbc, (1, C), dtype=jnp.float32) * 0.05

    A, x_out = attn_net_gated(x, wa, ba, wb, bb, wc, bc, tile_n=256)
    jax.block_until_ready((A, x_out))

    A_ref = _reference(x, wa, ba, wb, bb, wc, bc)
    assert A.shape == (N, C)
    assert x_out.shape == x.shape
    # bf16 MXU operands with f32 accumulation -> relaxed tolerance vs f32 ref.
    assert jnp.allclose(A, A_ref, atol=2e-2, rtol=2e-2)
    assert jnp.array_equal(x_out, x)

    print("KERNEL_OK")
</pallas_src>

<mosaic_0001>
module attributes {stable_mosaic.version = 11 : i64} {
  func.func @_gated_attn_kernel(%arg0: i32, %arg1: memref<256x128xf32, #tpu.memory_space<vmem>>, %arg2: memref<128x256xbf16, #tpu.memory_space<vmem>>, %arg3: memref<1x256xf32, #tpu.memory_space<vmem>>, %arg4: memref<1x128xf32, #tpu.memory_space<vmem>>, %arg5: memref<1x1xf32, #tpu.memory_space<vmem>>, %arg6: memref<256x1xf32, #tpu.memory_space<vmem>>) attributes {dimension_semantics = [#tpu.dimension_semantics<parallel>], iteration_bounds = array<i64: 2>, scalar_prefetch = 0 : i64, scratch_operands = 0 : i64, tpu.core_type = #tpu.core_type<tc>, window_params = [{transform_indices = @transform_0, window_bounds = array<i64: 256, 128>}, {pipeline_mode = #tpu.pipeline_mode<synchronous>, transform_indices = @transform_1, window_bounds = array<i64: 128, 256>}, {pipeline_mode = #tpu.pipeline_mode<synchronous>, transform_indices = @transform_2, window_bounds = array<i64: 1, 256>}, {pipeline_mode = #tpu.pipeline_mode<synchronous>, transform_indices = @transform_3, window_bounds = array<i64: 1, 128>}, {pipeline_mode = #tpu.pipeline_mode<synchronous>, transform_indices = @transform_4, window_bounds = array<i64: 1, 1>}, {transform_indices = @transform_5, window_bounds = array<i64: 256, 1>}]} {
    %c0 = arith.constant 0 : index
    %c0_0 = arith.constant 0 : index
    %0 = vector.load %arg1[%c0, %c0_0] : memref<256x128xf32, #tpu.memory_space<vmem>>, vector<256x128xf32>
    %1 = arith.truncf %0 : vector<256x128xf32> to vector<256x128xbf16>
    %c0_1 = arith.constant 0 : index
    %c0_2 = arith.constant 0 : index
    %2 = vector.load %arg2[%c0_1, %c0_2] : memref<128x256xbf16, #tpu.memory_space<vmem>>, vector<128x256xbf16>
    %cst = arith.constant dense<0.000000e+00> : vector<256x256xf32>
    %3 = tpu.matmul %1, %2, %cst {dimension_numbers = #tpu.dot_dimension_numbers<[1], [0], [0], [1], [0, 0, 1, 1], [], []>} : vector<256x128xbf16>, vector<128x256xbf16>, vector<256x256xf32> -> vector<256x256xf32>
    %c0_3 = arith.constant 0 : index
    %c0_4 = arith.constant 0 : index
    %4 = vector.load %arg3[%c0_3, %c0_4] : memref<1x256xf32, #tpu.memory_space<vmem>>, vector<1x256xf32>
    %5 = vector.broadcast %4 : vector<1x256xf32> to vector<256x256xf32>
    %6 = arith.addf %3, %5 : vector<256x256xf32>
    %7 = vector.extract_strided_slice %6 {offsets = [0, 0], sizes = [256, 128], strides = [1, 1]} : vector<256x256xf32> to vector<256x128xf32>
    %8 = math.tanh %7 : vector<256x128xf32>
    %9 = vector.extract_strided_slice %6 {offsets = [0, 128], sizes = [256, 128], strides = [1, 1]} : vector<256x256xf32> to vector<256x128xf32>
    %10 = arith.negf %9 : vector<256x128xf32>
    %11 = math.exp %10 : vector<256x128xf32>
    %cst_5 = arith.constant 1.000000e+00 : f32
    %12 = vector.broadcast %cst_5 : f32 to vector<256x128xf32>
    %13 = arith.addf %12, %11 : vector<256x128xf32>
    %14 = arith.divf %12, %13 : vector<256x128xf32>
    %15 = arith.mulf %8, %14 : vector<256x128xf32>
    %c0_6 = arith.constant 0 : index
    %c0_7 = arith.constant 0 : index
    %16 = vector.load %arg4[%c0_6, %c0_7] : memref<1x128xf32, #tpu.memory_space<vmem>>, vector<1x128xf32>
    %17 = vector.broadcast %16 : vector<1x128xf32> to vector<256x128xf32>
    %18 = arith.mulf %15, %17 : vector<256x128xf32>
    %cst_8 = arith.constant dense<0.000000e+00> : vector<256xf32>
    %19 = vector.multi_reduction <add>, %18, %cst_8 [1] : vector<256x128xf32> to vector<256xf32>
    %20 = vector.shape_cast %19 : vector<256xf32> to vector<256x1xf32>
    %c0_9 = arith.constant 0 : index
    %c0_10 = arith.constant 0 : index
    %21 = vector.load %arg5[%c0_9, %c0_10] : memref<1x1xf32, #tpu.memory_space<vmem>>, vector<1x1xf32>
    %22 = vector.broadcast %21 : vector<1x1xf32> to vector<256x1xf32>
    %23 = arith.addf %20, %22 : vector<256x1xf32>
    %c0_11 = arith.constant 0 : index
    %c0_12 = arith.constant 0 : index
    %24 = vector.load %arg6[%c0_11, %c0_12] : memref<256x1xf32, #tpu.memory_space<vmem>>, vector<256x1xf32>
    tpu.vector_store %arg6[%c0_11, %c0_12], %23 {strides = array<i32>} : memref<256x1xf32, #tpu.memory_space<vmem>>, vector<256x1xf32>,
    return
  }
  func.func @transform_0(%arg0: i32) -> (i32, i32) {
    %c0_i32 = arith.constant 0 : i32
    %c0_i32_0 = arith.constant 0 : i32
    return %arg0, %c0_i32 : i32, i32
  }
  func.func @transform_1(%arg0: i32) -> (i32, i32) {
    %c0_i32 = arith.constant 0 : i32
    %c0_i32_0 = arith.constant 0 : i32
    %c0_i32_1 = arith.constant 0 : i32
    return %c0_i32, %c0_i32_0 : i32, i32
  }
  func.func @transform_2(%arg0: i32) -> (i32, i32) {
    %c0_i32 = arith.constant 0 : i32
    %c0_i32_0 = arith.constant 0 : i32
    %c0_i32_1 = arith.constant 0 : i32
    return %c0_i32, %c0_i32_0 : i32, i32
  }
  func.func @transform_3(%arg0: i32) -> (i32, i32) {
    %c0_i32 = arith.constant 0 : i32
    %c0_i32_0 = arith.constant 0 : i32
    %c0_i32_1 = arith.constant 0 : i32
    return %c0_i32, %c0_i32_0 : i32, i32
  }
  func.func @transform_4(%arg0: i32) -> (i32, i32) {
    %c0_i32 = arith.constant 0 : i32
    %c0_i32_0 = arith.constant 0 : i32
    %c0_i32_1 = arith.constant 0 : i32
    return %c0_i32, %c0_i32_0 : i32, i32
  }
  func.func @transform_5(%arg0: i32) -> (i32, i32) {
    %c0_i32 = arith.constant 0 : i32
    %c0_i32_0 = arith.constant 0 : i32
    return %arg0, %c0_i32 : i32, i32
  }
}

</mosaic_0001>

<llo_original>
// kernel: tpu_custom_call.1
$region0: #{tpu_custom_call.1}
  #allocation0 [shape = 'u32[]', space=smem, size = 0x4, offset = 0x4, fixed_abs, tag = 'smem constant byte address 0x4 - core index']
  #allocation1 [shape = 'u32[144,128]{1,0:T(1,128)}', space=vmem, size = 0x12000, scoped, tag = 'internal scratch']
  #allocation2 [shape = 'f32[1,1]{1,0:T(1,128)S(1)}', space=vmem, size = 0x200, scoped, tag = 'scoped memory for tpu_custom_call.1']
  %s0 = inlined_call_operand.hbm [shape: f32[500,128], index: 0, kind: input, shape index: {}]
  %s1 = inlined_call_operand.hbm [shape: bf16[128,256], index: 1, kind: input, shape index: {}]
  %s2 = inlined_call_operand.vmem [shape: f32[1,256], index: 2, kind: input, shape index: {}]
  %s3 = inlined_call_operand.vmem [shape: f32[1,128], index: 3, kind: input, shape index: {}]
  %s4 = inlined_call_operand.<no memory space> [shape: f32[1,1], index: 4, kind: input, shape index: {}]
  %s5 = inlined_call_operand.vmem [shape: f32[500,1], index: 5, kind: output, shape index: {}]
  %s6 = sld [smem:[#allocation0]]
  $region109: #{tpu_custom_call.1} parent=0
    _
  %s8 = ssub.s32 1, %s6
  %s9 = scalar_select 0, %s8, %s6
  %v10 = vstv %s4
  %11 = vst [vmem:[#allocation2] sm:$0x1] %v10
  $region1: #{tpu_custom_call.1} parent=0
    #allocation3 [shape = 'u8[262144]{0}', space=vmem, size = 0x40000, scoped, tag = 'input window, operand 0']
    #allocation4 [shape = 's32[2]{0}', space=sflag, size = 0x8, scoped, tag = 'scoped memory for tpu_custom_call.1']
    #allocation5 [shape = 'u8[65536]{0}', space=vmem, size = 0x10000, scoped, tag = 'input window, operand 1, single buffered']
    #allocation6 [shape = 's32[1]{0}', space=sflag, size = 0x4, scoped, tag = 'scoped memory for tpu_custom_call.1']
    #allocation7 [shape = 'u8[262144]{0}', space=vmem, size = 0x40000, scoped, tag = 'output window, operand 0']
    %12 = vsyncpa [#allocation4], 0
    %s13 = scalar_lea.sflag [#allocation4], 1
    %14 = vsyncpa %s13, 0
    %15 = vsyncpa [#allocation6], 0
    loop: start=0, step=1, limit=4
    $region2: #{tpu_custom_call.1} parent=1 // loop_pre_header
      _
    $region3: #{tpu_custom_call.1} parent=1 // loop_header
      %s17 = sphi 0, %s21
      %p18 = scmp.ge.s32.totalorder %s17, 4
      %s27 = sphi 0, %s29
      %s30 = sphi 0, %s27
      %s31 = sphi 0, %s30
      %s47 = sphi 0, %s31
      %s51 = sphi 0, %s51
      %s53 = sphi 0, %s51
      %s54 = sphi 0, %s53
      %s68 = sphi 0, %s54
      %s72 = sphi 0, %s72
      %s74 = sphi 0, %s72
      %s75 = sphi 0, %s74
      %s89 = sphi 0, %s75
      %s93 = sphi 0, %s93
      %s95 = sphi 0, %s93
      %s96 = sphi 0, %s95
      %s110 = sphi 0, %s96
      %s114 = sphi 0, %s114
      %s116 = sphi 0, %s114
      %s117 = sphi 0, %s116
      %s131 = sphi 0, %s117
      %s137 = sphi 0, %s139
      %s140 = sphi 0, %s137
      %s141 = sphi 0, %s140
      %s157 = sphi 0, %s141
    $region4: #{tpu_custom_call.1} parent=1 // loop_header_branch
      %20 = sbr.rel (%p18) target = $region8
    $region5: #{tpu_custom_call.1} parent=1 // loop_body
      %s22 = ssub.s32 %s17, 1
      %s23 = ssub.s32 %s17, 2
      %s24 = sadd.s32 %s17, 1
      %s25 = ssub.s32 %s17, %s24
      %p26 = scmp.eq.s32.totalorder %s25, 0
      %s28 = sadd.s32 %s27, 1
      %s29 = scalar_select %p26, %s27, %s28
      %p32 = pneg %p26
      %p33 = scmp.eq.s32.totalorder %s17, 1
      %p34 = por %p32, %p33
      %p35 = scmp.ne.s32.totalorder %s27, %s30
      %p36 = scmp.eq.s32.totalorder %s17, 0
      %p37 = por %p35, %p36
      %p38 = scmp.ne.s32.totalorder %s27, %s30
      %p39 = scmp.eq.s32.totalorder %s22, 1
      %p40 = por %p38, %p39
      %p41 = scmp.ne.s32.totalorder %s30, %s31
      %p42 = scmp.eq.s32.totalorder %s22, 0
      %p43 = por %p41, %p42
      %p44 = scmp.ne.s32.totalorder %s30, %s31
      %p45 = scmp.eq.s32.totalorder %s23, 1
      %p46 = por %p44, %p45
      %p48 = scmp.ne.s32.totalorder %s31, %s47
      %p49 = scmp.eq.s32.totalorder %s23, 0
      %p50 = por %p48, %p49
      %s52 = sadd.s32 %s51, 1
      %p55 = scmp.eq.s32.totalorder %s17, 1
      %p56 = scmp.ne.s32.totalorder %s51, %s53
      %p57 = scmp.eq.s32.totalorder %s17, 0
      %p58 = por %p56, %p57
      %p59 = scmp.ne.s32.totalorder %s51, %s53
      %p60 = scmp.eq.s32.totalorder %s22, 1
      %p61 = por %p59, %p60
      %p62 = scmp.ne.s32.totalorder %s53, %s54
      %p63 = scmp.eq.s32.totalorder %s22, 0
      %p64 = por %p62, %p63
      %p65 = scmp.ne.s32.totalorder %s53, %s54
      %p66 = scmp.eq.s32.totalorder %s23, 1
      %p67 = por %p65, %p66
      %p69 = scmp.ne.s32.totalorder %s54, %s68
      %p70 = scmp.eq.s32.totalorder %s23, 0
      %p71 = por %p69, %p70
      %s73 = sadd.s32 %s72, 1
      %p76 = scmp.eq.s32.totalorder %s17, 1
      %p77 = scmp.ne.s32.totalorder %s72, %s74
      %p78 = scmp.eq.s32.totalorder %s17, 0
      %p79 = por %p77, %p78
      %p80 = scmp.ne.s32.totalorder %s72, %s74
      %p81 = scmp.eq.s32.totalorder %s22, 1
      %p82 = por %p80, %p81
      %p83 = scmp.ne.s32.totalorder %s74, %s75
      %p84 = scmp.eq.s32.totalorder %s22, 0
      %p85 = por %p83, %p84
      %p86 = scmp.ne.s32.totalorder %s74, %s75
      %p87 = scmp.eq.s32.totalorder %s23, 1
      %p88 = por %p86, %p87
      %p90 = scmp.ne.s32.totalorder %s75, %s89
      %p91 = scmp.eq.s32.totalorder %s23, 0
      %p92 = por %p90, %p91
      %s94 = sadd.s32 %s93, 1
      %p97 = scmp.eq.s32.totalorder %s17, 1
      %p98 = scmp.ne.s32.totalorder %s93, %s95
      %p99 = scmp.eq.s32.totalorder %s17, 0
      %p100 = por %p98, %p99
      %p101 = scmp.ne.s32.totalorder %s93, %s95
      %p102 = scmp.eq.s32.totalorder %s22, 1
      %p103 = por %p101, %p102
      %p104 = scmp.ne.s32.totalorder %s95, %s96
      %p105 = scmp.eq.s32.totalorder %s22, 0
      %p106 = por %p104, %p105
      %p107 = scmp.ne.s32.totalorder %s95, %s96
      %p108 = scmp.eq.s32.totalorder %s23, 1
      %p109 = por %p107, %p108
      %p111 = scmp.ne.s32.totalorder %s96, %s110
      %p112 = scmp.eq.s32.totalorder %s23, 0
      %p113 = por %p111, %p112
      %s115 = sadd.s32 %s114, 1
      %p118 = scmp.eq.s32.totalorder %s17, 1
      %p119 = scmp.ne.s32.totalorder %s114, %s116
      %p120 = scmp.eq.s32.totalorder %s17, 0
      %p121 = por %p119, %p120
      %p122 = scmp.ne.s32.totalorder %s114, %s116
      %p123 = scmp.eq.s32.totalorder %s22, 1
      %p124 = por %p122, %p123
      %p125 = scmp.ne.s32.totalorder %s116, %s117
      %p126 = scmp.eq.s32.totalorder %s22, 0
      %p127 = por %p125, %p126
      %p128 = scmp.ne.s32.totalorder %s116, %s117
      %p129 = scmp.eq.s32.totalorder %s23, 1
      %p130 = por %p128, %p129
      %p132 = scmp.ne.s32.totalorder %s117, %s131
      %p133 = scmp.eq.s32.totalorder %s23, 0
      %p134 = por %p132, %p133
      %s135 = ssub.s32 %s17, %s24
      %p136 = scmp.eq.s32.totalorder %s135, 0
      %s138 = sadd.s32 %s137, 1
      %s139 = scalar_select %p136, %s137, %s138
      %p142 = pneg %p136
      %p143 = scmp.eq.s32.totalorder %s17, 1
      %p144 = por %p142, %p143
      %p145 = scmp.ne.s32.totalorder %s137, %s140
      %p146 = scmp.eq.s32.totalorder %s17, 0
      %p147 = por %p145, %p146
      %p148 = scmp.ne.s32.totalorder %s137, %s140
      %p149 = scmp.eq.s32.totalorder %s22, 1
      %p150 = por %p148, %p149
      %p151 = scmp.ne.s32.totalorder %s140, %s141
      %p152 = scmp.eq.s32.totalorder %s22, 0
      %p153 = por %p151, %p152
      %p154 = scmp.ne.s32.totalorder %s140, %s141
      %p155 = scmp.eq.s32.totalorder %s23, 1
      %p156 = por %p154, %p155
      %p158 = scmp.ne.s32.totalorder %s141, %s157
      %p159 = scmp.eq.s32.totalorder %s23, 0
      %p160 = por %p158, %p159
      %p161 = scmp.le.s32.totalorder 1, %s17
      %p162 = scmp.lt.s32.totalorder %s17, 3
      %p163 = pnand %p161, %p162
      %p164 = pneg %p163
      // Predicated region
      $region9: #{tpu_custom_call.1} parent=5 // pred_check
        _
      $region10: #{tpu_custom_call.1} parent=5 // pred_check_branch
        %166 = sbr.rel (%p163) target = $region12
      $region11: #{tpu_custom_call.1} parent=5 // pred_region
        %s167 = ssub.s32 %s17, 1
        // Predicated region
        $region13: #{tpu_custom_call.1} parent=11 // pred_check
          %p168 = pneg %p64
        $region14: #{tpu_custom_call.1} parent=11 // pred_check_branch
          %170 = sbr.rel (%p168) target = $region16
        $region15: #{tpu_custom_call.1} parent=11 // pred_region
          %s172 = ssub.s32 2048, 2048
          %173 = vsyncadd [#allocation6], %s172
          %s174 = sshll.u32 [#allocation5], 4
          %s175 = int_to_ptr.vmem [resolvable:$true] %s174
          %180 = dma.hbm_to_vmem [thread:$0]  %s1, 2048, %s175, [#allocation6], 128, 128, 8
        $region16: #{tpu_custom_call.1} parent=11 // pred_fallthru
          _
        // Predicated region
        $region17: #{tpu_custom_call.1} parent=11 // pred_check
          %p181 = pneg %p85
        $region18: #{tpu_custom_call.1} parent=11 // pred_check_branch
          %183 = sbr.rel (%p181) target = $region20
        $region19: #{tpu_custom_call.1} parent=11 // pred_region
          _
        $region20: #{tpu_custom_call.1} parent=11 // pred_fallthru
          _
        // Predicated region
        $region21: #{tpu_custom_call.1} parent=11 // pred_check
          %p184 = pneg %p106
        $region22: #{tpu_custom_call.1} parent=11 // pred_check_branch
          %186 = sbr.rel (%p184) target = $region24
        $region23: #{tpu_custom_call.1} parent=11 // pred_region
          _
        $region24: #{tpu_custom_call.1} parent=11 // pred_fallthru
          _
        // Predicated region
        $region25: #{tpu_custom_call.1} parent=11 // pred_check
          %p187 = pneg %p127
        $region26: #{tpu_custom_call.1} parent=11 // pred_check_branch
          %189 = sbr.rel (%p187) target = $region28
        $region27: #{tpu_custom_call.1} parent=11 // pred_region
          _
        $region28: #{tpu_custom_call.1} parent=11 // pred_fallthru
          _
      $region12: #{tpu_custom_call.1} parent=5 // pred_fallthru
        _
      %p190 = scmp.lt.s32.totalorder %s17, 2
      // Predicated region
      $region29: #{tpu_custom_call.1} parent=5 // pred_check
        %p191 = pneg %p190
      $region30: #{tpu_custom_call.1} parent=5 // pred_check_branch
        %193 = sbr.rel (%p191) target = $region32
      $region31: #{tpu_custom_call.1} parent=5 // pred_region
        // Predicated region
        $region33: #{tpu_custom_call.1} parent=31 // pred_check
          %p194 = pneg %p37
        $region34: #{tpu_custom_call.1} parent=31 // pred_check_branch
          %196 = sbr.rel (%p194) target = $region36
        $region35: #{tpu_custom_call.1} parent=31 // pred_region
          %s197 = sand.u32 %s27, 1
          %s198 = scalar_lea.sflag [#allocation4], %s197
          %s199 = sand.u32 %s27, 1
          %s200 = smul.addr %s199, 256
          %s201 = scalar_lea.vmem [#allocation3], %s200
          %s202 = smul.u32 32, %s17
          %s203 = ssub.s32 63, %s202
          %p204 = scmp.lt.s32.totalorder %s203, 32
          %s205 = scalar_select %p204, %s203, 32
          %s206 = smul.u32 128, %s205
          %s208 = ssub.s32 4096, %s206
          %209 = vsyncadd %s198, %s208
          %p210 = scmp.ne.s32.totalorder 0, %s206
          %s211 = smul.addr %s202, 128
          %s212 = scalar_lea.hbm %s0, %s211
          %s213 = smul.u32 8, %s205
          %s214 = sshll.u32 %s201, 4
          %s215 = int_to_ptr.vmem [resolvable:$true] %s214
          %s216 = sshll.u32 %s213, 4
          %220 = dma.hbm_to_vmem [thread:$0]  (%p210), %s212, %s216, %s215, %s198, 128, 128, 8
        $region36: #{tpu_custom_call.1} parent=31 // pred_fallthru
          _
      $region32: #{tpu_custom_call.1} parent=5 // pred_fallthru
        _
      %p221 = scmp.le.s32.totalorder 1, %s17
      %p222 = scmp.lt.s32.totalorder %s17, 3
      %p223 = pnand %p221, %p222
      %p224 = pneg %p223
      // Predicated region
      $region37: #{tpu_custom_call.1} parent=5 // pred_check
        _
      $region38: #{tpu_custom_call.1} parent=5 // pred_check_branch
        %226 = sbr.rel (%p223) target = $region40
      $region39: #{tpu_custom_call.1} parent=5 // pred_region
        %s227 = ssub.s32 %s17, 1
        %s228 = sand.u32 %s30, 1
        %s229 = scalar_lea.sflag [#allocation4], %s228
        %s230 = sand.u32 %s30, 1
        %s231 = smul.addr %s230, 256
        %s232 = scalar_lea.vmem [#allocation3], %s231
        // Predicated region
        $region41: #{tpu_custom_call.1} parent=39 // pred_check
          %p233 = pneg %p43
        $region42: #{tpu_custom_call.1} parent=39 // pred_check_branch
          %235 = sbr.rel (%p233) target = $region44
        $region43: #{tpu_custom_call.1} parent=39 // pred_region
          %236 = dma.done %s229, 4096
        $region44: #{tpu_custom_call.1} parent=39 // pred_fallthru
          _
        // Predicated region
        $region45: #{tpu_custom_call.1} parent=39 // pred_check
          %p237 = pneg %p64
        $region46: #{tpu_custom_call.1} parent=39 // pred_check_branch
          %239 = sbr.rel (%p237) target = $region48
        $region47: #{tpu_custom_call.1} parent=39 // pred_region
          %240 = dma.done [#allocation6], 2048
        $region48: #{tpu_custom_call.1} parent=39 // pred_fallthru
          _
        %s241 = sand.u32 %s30, 1
        %s242 = scalar_lea.sflag [#allocation4], %s241
        %s243 = sand.u32 %s30, 1
        %s244 = smul.addr %s243, 256
        %s245 = scalar_lea.vmem [#allocation3], %s244
        %p246 = pneg %p43
        %p247 = pneg %p40
        %p248 = pneg %p64
        %p249 = pneg %p61
        %p250 = pneg %p85
        %p251 = pneg %p82
        %p252 = pneg %p106
        %p253 = pneg %p103
        %p254 = pneg %p127
        %p255 = pneg %p124
        %p256 = pneg %p153
        %p257 = pneg %p150
        %s258 = sand.u32 %s140, 1
        %s259 = sand.u32 %s140, 1
        %s260 = smul.addr %s259, 256
        %s261 = scalar_lea.vmem [#allocation7], %s260
        %s262 = smul.u32 32, %s22
        %s263 = ssub.s32 63, %s262
        %p264 = scmp.lt.s32.totalorder %s263, 32
        %s265 = scalar_select %p264, %s263, 32
        %s266 = smul.u32 128, %s265
        %s267 = smul.u32 32, %s22
        %s268 = ssub.s32 63, %s267
        %p269 = scmp.lt.s32.totalorder %s268, 32
        %s270 = scalar_select %p269, %s268, 32
        %s271 = smul.u32 128, %s270
        %v273 = vld [vmem:[%s232] sm:$0xff]
        %v274 = vld [vmem:[%s232 + $0x8] sm:$0xff]
        %v275 = vld [vmem:[%s232 + $0x10] sm:$0xff]
        %v276 = vld [vmem:[%s232 + $0x18] sm:$0xff]
        %v277 = vld [vmem:[%s232 + $0x20] sm:$0xff]
        %v278 = vld [vmem:[%s232 + $0x28] sm:$0xff]
        %v279 = vld [vmem:[%s232 + $0x30] sm:$0xff]
        %v280 = vld [vmem:[%s232 + $0x38] sm:$0xff]
        %v281 = vld [vmem:[%s232 + $0x40] sm:$0xff]
        %v282 = vld [vmem:[%s232 + $0x48] sm:$0xff]
        %v283 = vld [vmem:[%s232 + $0x50] sm:$0xff]
        %v284 = vld [vmem:[%s232 + $0x58] sm:$0xff]
        %v285 = vld [vmem:[%s232 + $0x60] sm:$0xff]
        %v286 = vld [vmem:[%s232 + $0x68] sm:$0xff]
        %v287 = vld [vmem:[%s232 + $0x70] sm:$0xff]
        %v288 = vld [vmem:[%s232 + $0x78] sm:$0xff]
        %v289 = vld [vmem:[%s232 + $0x80] sm:$0xff]
        %v290 = vld [vmem:[%s232 + $0x88] sm:$0xff]
        %v291 = vld [vmem:[%s232 + $0x90] sm:$0xff]
        %v292 = vld [vmem:[%s232 + $0x98] sm:$0xff]
        %v293 = vld [vmem:[%s232 + $0xa0] sm:$0xff]
        %v294 = vld [vmem:[%s232 + $0xa8] sm:$0xff]
        %v295 = vld [vmem:[%s232 + $0xb0] sm:$0xff]
        %v296 = vld [vmem:[%s232 + $0xb8] sm:$0xff]
        %v297 = vld [vmem:[%s232 + $0xc0] sm:$0xff]
        %v298 = vld [vmem:[%s232 + $0xc8] sm:$0xff]
        %v299 = vld [vmem:[%s232 + $0xd0] sm:$0xff]
        %v300 = vld [vmem:[%s232 + $0xd8] sm:$0xff]
        %v301 = vld [vmem:[%s232 + $0xe0] sm:$0xff]
        %v302 = vld [vmem:[%s232 + $0xe8] sm:$0xff]
        %v303 = vld [vmem:[%s232 + $0xf0] sm:$0xff]
        %v304 = vld [vmem:[%s232 + $0xf8] sm:$0xff]
        %v305 = vpack.c.bf16 %v274, %v273
        %v306 = vpack.c.bf16 %v276, %v275
        %v307 = vpack.c.bf16 %v278, %v277
        %v308 = vpack.c.bf16 %v280, %v279
        %v309 = vpack.c.bf16 %v282, %v281
        %v310 = vpack.c.bf16 %v284, %v283
        %v311 = vpack.c.bf16 %v286, %v285
        %v312 = vpack.c.bf16 %v288, %v287
        %v313 = vpack.c.bf16 %v290, %v289
        %v314 = vpack.c.bf16 %v292, %v291
        %v315 = vpack.c.bf16 %v294, %v293
        %v316 = vpack.c.bf16 %v296, %v295
        %v317 = vpack.c.bf16 %v298, %v297
        %v318 = vpack.c.bf16 %v300, %v299
        %v319 = vpack.c.bf16 %v302, %v301
        %v320 = vpack.c.bf16 %v304, %v303
        %v321 = vld [vmem:[#allocation5] sm:$0xff]
        %v322 = vld [vmem:[#allocation5 + $0x8] sm:$0xff]
        %v323 = vld [vmem:[#allocation5 + $0x10] sm:$0xff]
        %v324 = vld [vmem:[#allocation5 + $0x18] sm:$0xff]
        %v325 = vld [vmem:[#allocation5 + $0x20] sm:$0xff]
        %v326 = vld [vmem:[#allocation5 + $0x28] sm:$0xff]
        %v327 = vld [vmem:[#allocation5 + $0x30] sm:$0xff]
        %v328 = vld [vmem:[#allocation5 + $0x38] sm:$0xff]
        %v329 = vld [vmem:[#allocation5 + $0x40] sm:$0xff]
        %v330 = vld [vmem:[#allocation5 + $0x48] sm:$0xff]
        %v331 = vld [vmem:[#allocation5 + $0x50] sm:$0xff]
        %v332 = vld [vmem:[#allocation5 + $0x58] sm:$0xff]
        %v333 = vld [vmem:[#allocation5 + $0x60] sm:$0xff]
        %v334 = vld [vmem:[#allocation5 + $0x68] sm:$0xff]
        %v335 = vld [vmem:[#allocation5 + $0x70] sm:$0xff]
        %v336 = vld [vmem:[#allocation5 + $0x78] sm:$0xff]
        %v337 = vld [vmem:[%s2] sm:$0x3]
        %v339 = vlaneseq
        %v340 = vshrl.u32 %v339, 7
        %v341 = vsub.s32 0, %v340
        %v342 = vrot.slane %v337, %v341
        %v343 = vlaneseq
        %v344 = vshrl.u32 %v343, 7
        %v345 = vsub.s32 1, %v344
        %v346 = vrot.slane %v337, %v345
        %v365 = vunpack.c.l.b16 %v321
        %v366 = vunpack.c.h.b16 %v321
        %v367 = vunpack.c.l.b16 %v322
        %v368 = vunpack.c.h.b16 %v322
        %v369 = vunpack.c.l.b16 %v323
        %v370 = vunpack.c.h.b16 %v323
        %v371 = vunpack.c.l.b16 %v324
        %v372 = vunpack.c.h.b16 %v324
        %v373 = vunpack.c.l.b16 %v325
        %v374 = vunpack.c.h.b16 %v325
        %v375 = vunpack.c.l.b16 %v326
        %v376 = vunpack.c.h.b16 %v326
        %v377 = vunpack.c.l.b16 %v327
        %v378 = vunpack.c.h.b16 %v327
        %v379 = vunpack.c.l.b16 %v328
        %v380 = vunpack.c.h.b16 %v328
        %v381 = vunpack.c.l.b16 %v329
        %v382 = vunpack.c.h.b16 %v329
        %v383 = vunpack.c.l.b16 %v330
        %v384 = vunpack.c.h.b16 %v330
        %v385 = vunpack.c.l.b16 %v331
        %v386 = vunpack.c.h.b16 %v331
        %v387 = vunpack.c.l.b16 %v332
        %v388 = vunpack.c.h.b16 %v332
        %v389 = vunpack.c.l.b16 %v333
        %v390 = vunpack.c.h.b16 %v333
        %v391 = vunpack.c.l.b16 %v334
        %v392 = vunpack.c.h.b16 %v334
        %v393 = vunpack.c.l.b16 %v335
        %v394 = vunpack.c.h.b16 %v335
        %v395 = vunpack.c.l.b16 %v336
        %v396 = vunpack.c.h.b16 %v336
        %v397 = vpack.c.b16 %v367, %v365
        %v398 = vpack.c.b16 %v368, %v366
        %v399 = vpack.c.b16 %v371, %v369
        %v400 = vpack.c.b16 %v372, %v370
        %v401 = vpack.c.b16 %v375, %v373
        %v402 = vpack.c.b16 %v376, %v374
        %v403 = vpack.c.b16 %v379, %v377
        %v404 = vpack.c.b16 %v380, %v378
        %v405 = vpack.c.b16 %v383, %v381
        %v406 = vpack.c.b16 %v384, %v382
        %v407 = vpack.c.b16 %v387, %v385
        %v408 = vpack.c.b16 %v388, %v386
        %v409 = vpack.c.b16 %v391, %v389
        %v410 = vpack.c.b16 %v392, %v390
        %v411 = vpack.c.b16 %v395, %v393
        %v412 = vpack.c.b16 %v396, %v394
        %429 = vmatprep.subr.bf16.mxu0 %v398
        %430 = vmatpush1.bf16.msra.mxu0 %v397
        %431 = vmatprep.subr.bf16.mxu0 %v400
        %432 = vmatpush1.bf16.msra.mxu0 %v399
        %433 = vmatprep.subr.bf16.mxu0 %v402
        %434 = vmatpush1.bf16.msra.mxu0 %v401
        %435 = vmatprep.subr.bf16.mxu0 %v404
        %436 = vmatpush1.bf16.msra.mxu0 %v403
        %437 = vmatprep.subr.bf16.mxu0 %v406
        %438 = vmatpush1.bf16.msra.mxu0 %v405
        %439 = vmatprep.subr.bf16.mxu0 %v408
        %440 = vmatpush1.bf16.msra.mxu0 %v407
        %441 = vmatprep.subr.bf16.mxu0 %v410
        %442 = vmatpush1.bf16.msra.mxu0 %v409
        %443 = vmatprep.subr.bf16.mxu0 %v412
        %444 = vmatpush1.bf16.msra.mxu0 %v411
        %445 = vmatprep.subr.bf16.mxu0 0
        %446 = vmatpush1.bf16.msra.mxu0 0
        %447 = vmatprep.subr.bf16.mxu0 0
        %448 = vmatpush1.bf16.msra.mxu0 0
        %449 = vmatprep.subr.bf16.mxu0 0
        %450 = vmatpush1.bf16.msra.mxu0 0
        %451 = vmatprep.subr.bf16.mxu0 0
        %452 = vmatpush1.bf16.msra.mxu0 0
        %453 = vmatprep.subr.bf16.mxu0 0
        %454 = vmatpush1.bf16.msra.mxu0 0
        %455 = vmatprep.subr.bf16.mxu0 0
        %456 = vmatpush1.bf16.msra.mxu0 0
        %457 = vmatprep.subr.bf16.mxu0 0
        %458 = vmatpush1.bf16.msra.mxu0 0
        %459 = vmatprep.subr.bf16.mxu0 0
        %460 = vmatpush1.bf16.msra.mxu0 0
        %461 = vmatprep.mubr.bf16.mxu0 0
        %462 = vmatmul.mubr.bf16.gmra.mrb[0].mxu0 %v305
        %v463 = vpop.f32.mrb[0].mxu0
        %v464 = vadd.f32 %v342, %v463
        %v465 = vpop.f32.mrb[0].mxu0
        %v466 = vadd.f32 %v346, %v465
        %v467 = vpop.f32.mrb[0].mxu0
        %v468 = vadd.f32 %v342, %v467
        %v469 = vpop.f32.mrb[0].mxu0
        %v470 = vadd.f32 %v346, %v469
        %471 = vmatprep.mubr.bf16.mxu0 0
        %472 = vmatmul.mubr.bf16.gmra.mrb[0].mxu0 %v306
        %v473 = vpop.f32.mrb[0].mxu0
        %v474 = vadd.f32 %v342, %v473
        %v475 = vpop.f32.mrb[0].mxu0
        %v476 = vadd.f32 %v346, %v475
        %v477 = vpop.f32.mrb[0].mxu0
        %v478 = vadd.f32 %v342, %v477
        %v479 = vpop.f32.mrb[0].mxu0
        %v480 = vadd.f32 %v346, %v479
        %481 = vmatprep.mubr.bf16.mxu0 0
        %482 = vmatmul.mubr.bf16.gmra.mrb[0].mxu0 %v307
        %v483 = vpop.f32.mrb[0].mxu0
        %v484 = vadd.f32 %v342, %v483
        %v485 = vpop.f32.mrb[0].mxu0
        %v486 = vadd.f32 %v346, %v485
        %v487 = vpop.f32.mrb[0].mxu0
        %v488 = vadd.f32 %v342, %v487
        %v489 = vpop.f32.mrb[0].mxu0
        %v490 = vadd.f32 %v346, %v489
        %491 = vmatprep.mubr.bf16.mxu0 0
        %492 = vmatmul.mubr.bf16.gmra.mrb[0].mxu0 %v308
        %v493 = vpop.f32.mrb[0].mxu0
        %v494 = vadd.f32 %v342, %v493
        %v495 = vpop.f32.mrb[0].mxu0
        %v496 = vadd.f32 %v346, %v495
        %v497 = vpop.f32.mrb[0].mxu0
        %v498 = vadd.f32 %v342, %v497
        %v499 = vpop.f32.mrb[0].mxu0
        %v500 = vadd.f32 %v346, %v499
        %501 = vmatprep.mubr.bf16.mxu0 0
        %502 = vmatmul.mubr.bf16.gmra.mrb[0].mxu0 %v309
        %v503 = vpop.f32.mrb[0].mxu0
        %v504 = vadd.f32 %v342, %v503
        %v505 = vpop.f32.mrb[0].mxu0
        %v506 = vadd.f32 %v346, %v505
        %v507 = vpop.f32.mrb[0].mxu0
        %v508 = vadd.f32 %v342, %v507
        %v509 = vpop.f32.mrb[0].mxu0
        %v510 = vadd.f32 %v346, %v509
        %511 = vmatprep.mubr.bf16.mxu0 0
        %512 = vmatmul.mubr.bf16.gmra.mrb[0].mxu0 %v310
        %v513 = vpop.f32.mrb[0].mxu0
        %v514 = vadd.f32 %v342, %v513
        %v515 = vpop.f32.mrb[0].mxu0
        %v516 = vadd.f32 %v346, %v515
        %v517 = vpop.f32.mrb[0].mxu0
        %v518 = vadd.f32 %v342, %v517
        %v519 = vpop.f32.mrb[0].mxu0
        %v520 = vadd.f32 %v346, %v519
        %521 = vmatprep.mubr.bf16.mxu0 0
        %522 = vmatmul.mubr.bf16.gmra.mrb[0].mxu0 %v311
        %v523 = vpop.f32.mrb[0].mxu0
        %v524 = vadd.f32 %v342, %v523
        %v525 = vpop.f32.mrb[0].mxu0
        %v526 = vadd.f32 %v346, %v525
        %v527 = vpop.f32.mrb[0].mxu0
        %v528 = vadd.f32 %v342, %v527
        %v529 = vpop.f32.mrb[0].mxu0
        %v530 = vadd.f32 %v346, %v529
        %531 = vmatprep.mubr.bf16.mxu0 0
        %532 = vmatmul.mubr.bf16.gmra.mrb[0].mxu0 %v312
        %v533 = vpop.f32.mrb[0].mxu0
        %v534 = vadd.f32 %v342, %v533
        %v535 = vpop.f32.mrb[0].mxu0
        %v536 = vadd.f32 %v346, %v535
        %v537 = vpop.f32.mrb[0].mxu0
        %v538 = vadd.f32 %v342, %v537
        %v539 = vpop.f32.mrb[0].mxu0
        %v540 = vadd.f32 %v346, %v539
        %541 = vmatprep.mubr.bf16.mxu0 0
        %542 = vmatmul.mubr.bf16.gmra.mrb[0].mxu0 %v313
        %v543 = vpop.f32.mrb[0].mxu0
        %v544 = vadd.f32 %v342, %v543
        %v545 = vpop.f32.mrb[0].mxu0
        %v546 = vadd.f32 %v346, %v545
        %v547 = vpop.f32.mrb[0].mxu0
        %v548 = vadd.f32 %v342, %v547
        %v549 = vpop.f32.mrb[0].mxu0
        %v550 = vadd.f32 %v346, %v549
        %551 = vmatprep.mubr.bf16.mxu0 0
        %552 = vmatmul.mubr.bf16.gmra.mrb[0].mxu0 %v314
        %v553 = vpop.f32.mrb[0].mxu0
        %v554 = vadd.f32 %v342, %v553
        %v555 = vpop.f32.mrb[0].mxu0
        %v556 = vadd.f32 %v346, %v555
        %v557 = vpop.f32.mrb[0].mxu0
        %v558 = vadd.f32 %v342, %v557
        %v559 = vpop.f32.mrb[0].mxu0
        %v560 = vadd.f32 %v346, %v559
        %561 = vmatprep.mubr.bf16.mxu0 0
        %562 = vmatmul.mubr.bf16.gmra.mrb[0].mxu0 %v315
        %v563 = vpop.f32.mrb[0].mxu0
        %v564 = vadd.f32 %v342, %v563
        %v565 = vpop.f32.mrb[0].mxu0
        %v566 = vadd.f32 %v346, %v565
        %v567 = vpop.f32.mrb[0].mxu0
        %v568 = vadd.f32 %v342, %v567
        %v569 = vpop.f32.mrb[0].mxu0
        %v570 = vadd.f32 %v346, %v569
        %571 = vmatprep.mubr.bf16.mxu0 0
        %572 = vmatmul.mubr.bf16.gmra.mrb[0].mxu0 %v316
        %v573 = vpop.f32.mrb[0].mxu0
        %v574 = vadd.f32 %v342, %v573
        %v575 = vpop.f32.mrb[0].mxu0
        %v576 = vadd.f32 %v346, %v575
        %v577 = vpop.f32.mrb[0].mxu0
        %v578 = vadd.f32 %v342, %v577
        %v579 = vpop.f32.mrb[0].mxu0
        %v580 = vadd.f32 %v346, %v579
        %581 = vmatprep.mubr.bf16.mxu0 0
        %582 = vmatmul.mubr.bf16.gmra.mrb[0].mxu0 %v317
        %v583 = vpop.f32.mrb[0].mxu0
        %v584 = vadd.f32 %v342, %v583
        %v585 = vpop.f32.mrb[0].mxu0
        %v586 = vadd.f32 %v346, %v585
        %v587 = vpop.f32.mrb[0].mxu0
        %v588 = vadd.f32 %v342, %v587
        %v589 = vpop.f32.mrb[0].mxu0
        %v590 = vadd.f32 %v346, %v589
        %591 = vmatprep.mubr.bf16.mxu0 0
        %592 = vmatmul.mubr.bf16.gmra.mrb[0].mxu0 %v318
        %v593 = vpop.f32.mrb[0].mxu0
        %v594 = vadd.f32 %v342, %v593
        %v595 = vpop.f32.mrb[0].mxu0
        %v596 = vadd.f32 %v346, %v595
        %v597 = vpop.f32.mrb[0].mxu0
        %v598 = vadd.f32 %v342, %v597
        %v599 = vpop.f32.mrb[0].mxu0
        %v600 = vadd.f32 %v346, %v599
        %601 = vmatprep.mubr.bf16.mxu0 0
        %602 = vmatmul.mubr.bf16.gmra.mrb[0].mxu0 %v319
        %v603 = vpop.f32.mrb[0].mxu0
        %v604 = vadd.f32 %v342, %v603
        %v605 = vpop.f32.mrb[0].mxu0
        %v606 = vadd.f32 %v346, %v605
        %v607 = vpop.f32.mrb[0].mxu0
        %v608 = vadd.f32 %v342, %v607
        %v609 = vpop.f32.mrb[0].mxu0
        %v610 = vadd.f32 %v346, %v609
        %611 = vmatprep.mubr.bf16.mxu0 0
        %612 = vmatmul.mubr.bf16.gmra.mrb[0].mxu0 %v320
        %v613 = vpop.f32.mrb[0].mxu0
        %v614 = vadd.f32 %v342, %v613
        %v615 = vpop.f32.mrb[0].mxu0
        %v616 = vadd.f32 %v346, %v615
        %v617 = vpop.f32.mrb[0].mxu0
        %v618 = vadd.f32 %v342, %v617
        %v619 = vpop.f32.mrb[0].mxu0
        %v620 = vadd.f32 %v346, %v619
        %621 = vdwg.mxu0
        %v622 = vtanh.pop %v464
        %v623 = vtanh.pop %v468
        %v624 = vtanh.pop %v474
        %v625 = vtanh.pop %v478
        %v626 = vtanh.pop %v484
        %v627 = vtanh.pop %v488
        %v628 = vtanh.pop %v494
        %v629 = vtanh.pop %v498
        %v630 = vtanh.pop %v504
        %v631 = vtanh.pop %v508
        %v632 = vtanh.pop %v514
        %v633 = vtanh.pop %v518
        %v634 = vtanh.pop %v524
        %v635 = vtanh.pop %v528
        %v636 = vtanh.pop %v534
        %v637 = vtanh.pop %v538
        %v638 = vtanh.pop %v544
        %v639 = vtanh.pop %v548
        %v640 = vtanh.pop %v554
        %v641 = vtanh.pop %v558
        %v642 = vtanh.pop %v564
        %v643 = vtanh.pop %v568
        %v644 = vtanh.pop %v574
        %v645 = vtanh.pop %v578
        %v646 = vtanh.pop %v584
        %v647 = vtanh.pop %v588
        %v648 = vtanh.pop %v594
        %v649 = vtanh.pop %v598
        %v650 = vtanh.pop %v604
        %v651 = vtanh.pop %v608
        %v652 = vtanh.pop %v614
        %v653 = vtanh.pop %v618
        %v654 = vxor.u32 %v466, 2147483648
        %v655 = vxor.u32 %v470, 2147483648
        %v656 = vxor.u32 %v476, 2147483648
        %v657 = vxor.u32 %v480, 2147483648
        %v658 = vxor.u32 %v486, 2147483648
        %v659 = vxor.u32 %v490, 2147483648
        %v660 = vxor.u32 %v496, 2147483648
        %v661 = vxor.u32 %v500, 2147483648
        %v662 = vxor.u32 %v506, 2147483648
        %v663 = vxor.u32 %v510, 2147483648
        %v664 = vxor.u32 %v516, 2147483648
        %v665 = vxor.u32 %v520, 2147483648
        %v666 = vxor.u32 %v526, 2147483648
        %v667 = vxor.u32 %v530, 2147483648
        %v668 = vxor.u32 %v536, 2147483648
        %v669 = vxor.u32 %v540, 2147483648
        %v670 = vxor.u32 %v546, 2147483648
        %v671 = vxor.u32 %v550, 2147483648
        %v672 = vxor.u32 %v556, 2147483648
        %v673 = vxor.u32 %v560, 2147483648
        %v674 = vxor.u32 %v566, 2147483648
        %v675 = vxor.u32 %v570, 2147483648
        %v676 = vxor.u32 %v576, 2147483648
        %v677 = vxor.u32 %v580, 2147483648
        %v678 = vxor.u32 %v586, 2147483648
        %v679 = vxor.u32 %v590, 2147483648
        %v680 = vxor.u32 %v596, 2147483648
        %v681 = vxor.u32 %v600, 2147483648
        %v682 = vxor.u32 %v606, 2147483648
        %v683 = vxor.u32 %v610, 2147483648
        %v684 = vxor.u32 %v616, 2147483648
        %v685 = vxor.u32 %v620, 2147483648
        %v686 = vmul.f32 %v654, 1.442695
        %v687 = vpow.pop %v686
        %v688 = vmul.f32 %v655, 1.442695
        %v689 = vpow.pop %v688
        %v690 = vmul.f32 %v656, 1.442695
        %v691 = vpow.pop %v690
        %v692 = vmul.f32 %v657, 1.442695
        %v693 = vpow.pop %v692
        %v694 = vmul.f32 %v658, 1.442695
        %v695 = vpow.pop %v694
        %v696 = vmul.f32 %v659, 1.442695
        %v697 = vpow.pop %v696
        %v698 = vmul.f32 %v660, 1.442695
        %v699 = vpow.pop %v698
        %v700 = vmul.f32 %v661, 1.442695
        %v701 = vpow.pop %v700
        %v702 = vmul.f32 %v662, 1.442695
        %v703 = vpow.pop %v702
        %v704 = vmul.f32 %v663, 1.442695
        %v705 = vpow.pop %v704
        %v706 = vmul.f32 %v664, 1.442695
        %v707 = vpow.pop %v706
        %v708 = vmul.f32 %v665, 1.442695
        %v709 = vpow.pop %v708
        %v710 = vmul.f32 %v666, 1.442695
        %v711 = vpow.pop %v710
        %v712 = vmul.f32 %v667, 1.442695
        %v713 = vpow.pop %v712
        %v714 = vmul.f32 %v668, 1.442695
        %v715 = vpow.pop %v714
        %v716 = vmul.f32 %v669, 1.442695
        %v717 = vpow.pop %v716
        %v718 = vmul.f32 %v670, 1.442695
        %v719 = vpow.pop %v718
        %v720 = vmul.f32 %v671, 1.442695
        %v721 = vpow.pop %v720
        %v722 = vmul.f32 %v672, 1.442695
        %v723 = vpow.pop %v722
        %v724 = vmul.f32 %v673, 1.442695
        %v725 = vpow.pop %v724
        %v726 = vmul.f32 %v674, 1.442695
        %v727 = vpow.pop %v726
        %v728 = vmul.f32 %v675, 1.442695
        %v729 = vpow.pop %v728
        %v730 = vmul.f32 %v676, 1.442695
        %v731 = vpow.pop %v730
        %v732 = vmul.f32 %v677, 1.442695
        %v733 = vpow.pop %v732
        %v734 = vmul.f32 %v678, 1.442695
        %v735 = vpow.pop %v734
        %v736 = vmul.f32 %v679, 1.442695
        %v737 = vpow.pop %v736
        %v738 = vmul.f32 %v680, 1.442695
        %v739 = vpow.pop %v738
        %v740 = vmul.f32 %v681, 1.442695
        %v741 = vpow.pop %v740
        %v742 = vmul.f32 %v682, 1.442695
        %v743 = vpow.pop %v742
        %v744 = vmul.f32 %v683, 1.442695
        %v745 = vpow.pop %v744
        %v746 = vmul.f32 %v684, 1.442695
        %v747 = vpow.pop %v746
        %v748 = vmul.f32 %v685, 1.442695
        %v749 = vpow.pop %v748
        %v750 = vadd.f32 %v687, 1.0
        %v751 = vadd.f32 %v689, 1.0
        %v752 = vadd.f32 %v691, 1.0
        %v753 = vadd.f32 %v693, 1.0
        %v754 = vadd.f32 %v695, 1.0
        %v755 = vadd.f32 %v697, 1.0
        %v756 = vadd.f32 %v699, 1.0
        %v757 = vadd.f32 %v701, 1.0
        %v758 = vadd.f32 %v703, 1.0
        %v759 = vadd.f32 %v705, 1.0
        %v760 = vadd.f32 %v707, 1.0
        %v761 = vadd.f32 %v709, 1.0
        %v762 = vadd.f32 %v711, 1.0
        %v763 = vadd.f32 %v713, 1.0
        %v764 = vadd.f32 %v715, 1.0
        %v765 = vadd.f32 %v717, 1.0
        %v766 = vadd.f32 %v719, 1.0
        %v767 = vadd.f32 %v721, 1.0
        %v768 = vadd.f32 %v723, 1.0
        %v769 = vadd.f32 %v725, 1.0
        %v770 = vadd.f32 %v727, 1.0
        %v771 = vadd.f32 %v729, 1.0
        %v772 = vadd.f32 %v731, 1.0
        %v773 = vadd.f32 %v733, 1.0
        %v774 = vadd.f32 %v735, 1.0
        %v775 = vadd.f32 %v737, 1.0
        %v776 = vadd.f32 %v739, 1.0
        %v777 = vadd.f32 %v741, 1.0
        %v778 = vadd.f32 %v743, 1.0
        %v779 = vadd.f32 %v745, 1.0
        %v780 = vadd.f32 %v747, 1.0
        %v781 = vadd.f32 %v749, 1.0
        %v782 = vrcp.pop %v750
        %v783 = vmul.f32 1.0, %v782
        %v784 = vrcp.pop %v751
        %v785 = vmul.f32 1.0, %v784
        %v786 = vrcp.pop %v752
        %v787 = vmul.f32 1.0, %v786
        %v788 = vrcp.pop %v753
        %v789 = vmul.f32 1.0, %v788
        %v790 = vrcp.pop %v754
        %v791 = vmul.f32 1.0, %v790
        %v792 = vrcp.pop %v755
        %v793 = vmul.f32 1.0, %v792
        %v794 = vrcp.pop %v756
        %v795 = vmul.f32 1.0, %v794
        %v796 = vrcp.pop %v757
        %v797 = vmul.f32 1.0, %v796
        %v798 = vrcp.pop %v758
        %v799 = vmul.f32 1.0, %v798
        %v800 = vrcp.pop %v759
        %v801 = vmul.f32 1.0, %v800
        %v802 = vrcp.pop %v760
        %v803 = vmul.f32 1.0, %v802
        %v804 = vrcp.pop %v761
        %v805 = vmul.f32 1.0, %v804
        %v806 = vrcp.pop %v762
        %v807 = vmul.f32 1.0, %v806
        %v808 = vrcp.pop %v763
        %v809 = vmul.f32 1.0, %v808
        %v810 = vrcp.pop %v764
        %v811 = vmul.f32 1.0, %v810
        %v812 = vrcp.pop %v765
        %v813 = vmul.f32 1.0, %v812
        %v814 = vrcp.pop %v766
        %v815 = vmul.f32 1.0, %v814
        %v816 = vrcp.pop %v767
        %v817 = vmul.f32 1.0, %v816
        %v818 = vrcp.pop %v768
        %v819 = vmul.f32 1.0, %v818
        %v820 = vrcp.pop %v769
        %v821 = vmul.f32 1.0, %v820
        %v822 = vrcp.pop %v770
        %v823 = vmul.f32 1.0, %v822
        %v824 = vrcp.pop %v771
        %v825 = vmul.f32 1.0, %v824
        %v826 = vrcp.pop %v772
        %v827 = vmul.f32 1.0, %v826
        %v828 = vrcp.pop %v773
        %v829 = vmul.f32 1.0, %v828
        %v830 = vrcp.pop %v774
        %v831 = vmul.f32 1.0, %v830
        %v832 = vrcp.pop %v775
        %v833 = vmul.f32 1.0, %v832
        %v834 = vrcp.pop %v776
        %v835 = vmul.f32 1.0, %v834
        %v836 = vrcp.pop %v777
        %v837 = vmul.f32 1.0, %v836
        %v838 = vrcp.pop %v778
        %v839 = vmul.f32 1.0, %v838
        %v840 = vrcp.pop %v779
        %v841 = vmul.f32 1.0, %v840
        %v842 = vrcp.pop %v780
        %v843 = vmul.f32 1.0, %v842
        %v844 = vrcp.pop %v781
        %v845 = vmul.f32 1.0, %v844
        %v846 = vmul.f32 %v622, %v783
        %v847 = vmul.f32 %v623, %v785
        %v848 = vmul.f32 %v624, %v787
        %v849 = vmul.f32 %v625, %v789
        %v850 = vmul.f32 %v626, %v791
        %v851 = vmul.f32 %v627, %v793
        %v852 = vmul.f32 %v628, %v795
        %v853 = vmul.f32 %v629, %v797
        %v854 = vmul.f32 %v630, %v799
        %v855 = vmul.f32 %v631, %v801
        %v856 = vmul.f32 %v632, %v803
        %v857 = vmul.f32 %v633, %v805
        %v858 = vmul.f32 %v634, %v807
        %v859 = vmul.f32 %v635, %v809
        %v860 = vmul.f32 %v636, %v811
        %v861 = vmul.f32 %v637, %v813
        %v862 = vmul.f32 %v638, %v815
        %v863 = vmul.f32 %v639, %v817
        %v864 = vmul.f32 %v640, %v819
        %v865 = vmul.f32 %v641, %v821
        %v866 = vmul.f32 %v642, %v823
        %v867 = vmul.f32 %v643, %v825
        %v868 = vmul.f32 %v644, %v827
        %v869 = vmul.f32 %v645, %v829
        %v870 = vmul.f32 %v646, %v831
        %v871 = vmul.f32 %v647, %v833
        %v872 = vmul.f32 %v648, %v835
        %v873 = vmul.f32 %v649, %v837
        %v874 = vmul.f32 %v650, %v839
        %v875 = vmul.f32 %v651, %v841
        %v876 = vmul.f32 %v652, %v843
        %v877 = vmul.f32 %v653, %v845
        %v878 = vld [vmem:[%s3] sm:$0x1]
        %v880 = vlaneseq
        %v881 = vshrl.u32 %v880, 7
        %v882 = vsub.s32 0, %v881
        %v883 = vrot.slane %v878, %v882
        %v885 = vmul.f32 %v846, %v883
        %v886 = vmul.f32 %v847, %v883
        %v887 = vmul.f32 %v848, %v883
        %v888 = vmul.f32 %v849, %v883
        %v889 = vmul.f32 %v850, %v883
        %v890 = vmul.f32 %v851, %v883
        %v891 = vmul.f32 %v852, %v883
        %v892 = vmul.f32 %v853, %v883
        %v893 = vmul.f32 %v854, %v883
        %v894 = vmul.f32 %v855, %v883
        %v895 = vmul.f32 %v856, %v883
        %v896 = vmul.f32 %v857, %v883
        %v897 = vmul.f32 %v858, %v883
        %v898 = vmul.f32 %v859, %v883
        %v899 = vmul.f32 %v860, %v883
        %v900 = vmul.f32 %v861, %v883
        %v901 = vmul.f32 %v862, %v883
        %v902 = vmul.f32 %v863, %v883
        %v903 = vmul.f32 %v864, %v883
        %v904 = vmul.f32 %v865, %v883
        %v905 = vmul.f32 %v866, %v883
        %v906 = vmul.f32 %v867, %v883
        %v907 = vmul.f32 %v868, %v883
        %v908 = vmul.f32 %v869, %v883
        %v909 = vmul.f32 %v870, %v883
        %v910 = vmul.f32 %v871, %v883
        %v911 = vmul.f32 %v872, %v883
        %v912 = vmul.f32 %v873, %v883
        %v913 = vmul.f32 %v874, %v883
        %v914 = vmul.f32 %v875, %v883
        %v915 = vmul.f32 %v876, %v883
        %v916 = vmul.f32 %v877, %v883
        %917 = vadd.xlane.f32.xlu0 %v885
        %v918 = vpop.xlane.xlu0 %917
        %919 = vadd.xlane.f32.xlu0 %v886
        %v920 = vpop.xlane.xlu0 %919
        %921 = vadd.xlane.f32.xlu0 %v887
        %v922 = vpop.xlane.xlu0 %921
        %923 = vadd.xlane.f32.xlu0 %v888
        %v924 = vpop.xlane.xlu0 %923
        %925 = vadd.xlane.f32.xlu0 %v889
        %v926 = vpop.xlane.xlu0 %925
        %927 = vadd.xlane.f32.xlu0 %v890
        %v928 = vpop.xlane.xlu0 %927
        %929 = vadd.xlane.f32.xlu0 %v891
        %v930 = vpop.xlane.xlu0 %929
        %931 = vadd.xlane.f32.xlu0 %v892
        %v932 = vpop.xlane.xlu0 %931
        %933 = vadd.xlane.f32.xlu0 %v893
        %v934 = vpop.xlane.xlu0 %933
        %935 = vadd.xlane.f32.xlu0 %v894
        %v936 = vpop.xlane.xlu0 %935
        %937 = vadd.xlane.f32.xlu0 %v895
        %v938 = vpop.xlane.xlu0 %937
        %939 = vadd.xlane.f32.xlu0 %v896
        %v940 = vpop.xlane.xlu0 %939
        %941 = vadd.xlane.f32.xlu0 %v897
        %v942 = vpop.xlane.xlu0 %941
        %943 = vadd.xlane.f32.xlu0 %v898
        %v944 = vpop.xlane.xlu0 %943
        %945 = vadd.xlane.f32.xlu0 %v899
        %v946 = vpop.xlane.xlu0 %945
        %947 = vadd.xlane.f32.xlu0 %v900
        %v948 = vpop.xlane.xlu0 %947
        %949 = vadd.xlane.f32.xlu0 %v901
        %v950 = vpop.xlane.xlu0 %949
        %951 = vadd.xlane.f32.xlu0 %v902
        %v952 = vpop.xlane.xlu0 %951
        %953 = vadd.xlane.f32.xlu0 %v903
        %v954 = vpop.xlane.xlu0 %953
        %955 = vadd.xlane.f32.xlu0 %v904
        %v956 = vpop.xlane.xlu0 %955
        %957 = vadd.xlane.f32.xlu0 %v905
        %v958 = vpop.xlane.xlu0 %957
        %959 = vadd.xlane.f32.xlu0 %v906
        %v960 = vpop.xlane.xlu0 %959
        %961 = vadd.xlane.f32.xlu0 %v907
        %v962 = vpop.xlane.xlu0 %961
        %963 = vadd.xlane.f32.xlu0 %v908
        %v964 = vpop.xlane.xlu0 %963
        %965 = vadd.xlane.f32.xlu0 %v909
        %v966 = vpop.xlane.xlu0 %965
        %967 = vadd.xlane.f32.xlu0 %v910
        %v968 = vpop.xlane.xlu0 %967
        %969 = vadd.xlane.f32.xlu0 %v911
        %v970 = vpop.xlane.xlu0 %969
        %971 = vadd.xlane.f32.xlu0 %v912
        %v972 = vpop.xlane.xlu0 %971
        %973 = vadd.xlane.f32.xlu0 %v913
        %v974 = vpop.xlane.xlu0 %973
        %975 = vadd.xlane.f32.xlu0 %v914
        %v976 = vpop.xlane.xlu0 %975
        %977 = vadd.xlane.f32.xlu0 %v915
        %v978 = vpop.xlane.xlu0 %977
        %979 = vadd.xlane.f32.xlu0 %v916
        %v980 = vpop.xlane.xlu0 %979
        %v981 = vld [vmem:[#allocation2] sm:$0x1]
        %v983 = vlaneseq
        %v984 = vshrl.u32 %v983, 7
        %v985 = vsub.s32 0, %v984
        %v986 = vrot.slane %v981, %v985
        %v988 = vadd.f32 %v918, %v986
        %v989 = vadd.f32 %v920, %v986
        %v990 = vadd.f32 %v922, %v986
        %v991 = vadd.f32 %v924, %v986
        %v992 = vadd.f32 %v926, %v986
        %v993 = vadd.f32 %v928, %v986
        %v994 = vadd.f32 %v930, %v986
        %v995 = vadd.f32 %v932, %v986
        %v996 = vadd.f32 %v934, %v986
        %v997 = vadd.f32 %v936, %v986
        %v998 = vadd.f32 %v938, %v986
        %v999 = vadd.f32 %v940, %v986
        %v1000 = vadd.f32 %v942, %v986
        %v1001 = vadd.f32 %v944, %v986
        %v1002 = vadd.f32 %v946, %v986
        %v1003 = vadd.f32 %v948, %v986
        %v1004 = vadd.f32 %v950, %v986
        %v1005 = vadd.f32 %v952, %v986
        %v1006 = vadd.f32 %v954, %v986
        %v1007 = vadd.f32 %v956, %v986
        %v1008 = vadd.f32 %v958, %v986
        %v1009 = vadd.f32 %v960, %v986
        %v1010 = vadd.f32 %v962, %v986
        %v1011 = vadd.f32 %v964, %v986
        %v1012 = vadd.f32 %v966, %v986
        %v1013 = vadd.f32 %v968, %v986
        %v1014 = vadd.f32 %v970, %v986
        %v1015 = vadd.f32 %v972, %v986
        %v1016 = vadd.f32 %v974, %v986
        %v1017 = vadd.f32 %v976, %v986
        %v1018 = vadd.f32 %v978, %v986
        %v1019 = vadd.f32 %v980, %v986
        %vm1020 = vcmask 7168
        %1021 = vst.msk [vmem:[%s261] sm:$0xff] %vm1020, %v988
        %1022 = vst.msk [vmem:[%s261 + $0x8] sm:$0xff] %vm1020, %v989
        %1023 = vst.msk [vmem:[%s261 + $0x10] sm:$0xff] %vm1020, %v990
        %1024 = vst.msk [vmem:[%s261 + $0x18] sm:$0xff] %vm1020, %v991
        %1025 = vst.msk [vmem:[%s261 + $0x20] sm:$0xff] %vm1020, %v992
        %1026 = vst.msk [vmem:[%s261 + $0x28] sm:$0xff] %vm1020, %v993
        %1027 = vst.msk [vmem:[%s261 + $0x30] sm:$0xff] %vm1020, %v994
        %1028 = vst.msk [vmem:[%s261 + $0x38] sm:$0xff] %vm1020, %v995
        %1029 = vst.msk [vmem:[%s261 + $0x40] sm:$0xff] %vm1020, %v996
        %1030 = vst.msk [vmem:[%s261 + $0x48] sm:$0xff] %vm1020, %v997
        %1031 = vst.msk [vmem:[%s261 + $0x50] sm:$0xff] %vm1020, %v998
        %1032 = vst.msk [vmem:[%s261 + $0x58] sm:$0xff] %vm1020, %v999
        %1033 = vst.msk [vmem:[%s261 + $0x60] sm:$0xff] %vm1020, %v1000
        %1034 = vst.msk [vmem:[%s261 + $0x68] sm:$0xff] %vm1020, %v1001
        %1035 = vst.msk [vmem:[%s261 + $0x70] sm:$0xff] %vm1020, %v1002
        %1036 = vst.msk [vmem:[%s261 + $0x78] sm:$0xff] %vm1020, %v1003
        %1037 = vst.msk [vmem:[%s261 + $0x80] sm:$0xff] %vm1020, %v1004
        %1038 = vst.msk [vmem:[%s261 + $0x88] sm:$0xff] %vm1020, %v1005
        %1039 = vst.msk [vmem:[%s261 + $0x90] sm:$0xff] %vm1020, %v1006
        %1040 = vst.msk [vmem:[%s261 + $0x98] sm:$0xff] %vm1020, %v1007
        %1041 = vst.msk [vmem:[%s261 + $0xa0] sm:$0xff] %vm1020, %v1008
        %1042 = vst.msk [vmem:[%s261 + $0xa8] sm:$0xff] %vm1020, %v1009
        %1043 = vst.msk [vmem:[%s261 + $0xb0] sm:$0xff] %vm1020, %v1010
        %1044 = vst.msk [vmem:[%s261 + $0xb8] sm:$0xff] %vm1020, %v1011
        %1045 = vst.msk [vmem:[%s261 + $0xc0] sm:$0xff] %vm1020, %v1012
        %1046 = vst.msk [vmem:[%s261 + $0xc8] sm:$0xff] %vm1020, %v1013
        %1047 = vst.msk [vmem:[%s261 + $0xd0] sm:$0xff] %vm1020, %v1014
        %1048 = vst.msk [vmem:[%s261 + $0xd8] sm:$0xff] %vm1020, %v1015
        %1049 = vst.msk [vmem:[%s261 + $0xe0] sm:$0xff] %vm1020, %v1016
        %1050 = vst.msk [vmem:[%s261 + $0xe8] sm:$0xff] %vm1020, %v1017
        %1051 = vst.msk [vmem:[%s261 + $0xf0] sm:$0xff] %vm1020, %v1018
        %1052 = vst.msk [vmem:[%s261 + $0xf8] sm:$0xff] %vm1020, %v1019
        %s1053 = sand.u32 %s140, 1
        %s1054 = sand.u32 %s140, 1
        %s1055 = smul.addr %s1054, 256
        %s1056 = scalar_lea.vmem [#allocation7], %s1055
        // Predicated region
        $region49: #{tpu_custom_call.1} parent=39 // pred_check
          %p1057 = pneg %p150
        $region50: #{tpu_custom_call.1} parent=39 // pred_check_branch
          %1059 = sbr.rel (%p1057) target = $region52
        $region51: #{tpu_custom_call.1} parent=39 // pred_region
          %s1060 = smul.u32 32, %s22
          %s1061 = ssub.s32 63, %s1060
          %p1062 = scmp.lt.s32.totalorder %s1061, 32
          %s1063 = scalar_select %p1062, %s1061, 32
          %s1064 = smul.u32 128, %s1063
          %p1065 = scmp.ne.s32.totalorder 0, %s1064
          %s1066 = smul.addr %s1060, 8
          %s1067 = scalar_lea.vmem %s5, %s1066
          // Predicated region
          $region53: #{tpu_custom_call.1} parent=51 // pred_check
            %p1068 = pneg %p1065
          $region54: #{tpu_custom_call.1} parent=51 // pred_check_branch
            %1070 = sbr.rel (%p1068) target = $region56
          $region55: #{tpu_custom_call.1} parent=51 // pred_region
            // Predicated region
            $region57: #{tpu_custom_call.1} parent=55 // pred_check
              _
            $region58: #{tpu_custom_call.1} parent=55 // pred_check_branch
              %1072 = sbr.rel (0) target = $region60
            $region59: #{tpu_custom_call.1} parent=55 // pred_region
              // Predicated region
              $region79: #{tpu_custom_call.1} parent=59 // pred_check
                _
              $region80: #{tpu_custom_call.1} parent=59 // pred_check_branch
                %1183 = sbr.rel (0) target = $region82
              $region81: #{tpu_custom_call.1} parent=59 // pred_region
                %s1184 = sshrl.u32 %s1063, 5
                // While loop
                $region83: #{tpu_custom_call.1} parent=81 // loop_pre_header
                  _
                $region84: #{tpu_custom_call.1} parent=81 // loop_header
                  %s1186 = sphi 0, %s1188
                  %p1187 = scmp.ge.s32.totalorder %s1186, %s1184
                  %s1191 = sphi 0, %s1260
                  %s1192 = sphi %s1056, %s1263
                  %s1193 = sphi %s1067, %s1264
                $region85: #{tpu_custom_call.1} parent=81 // loop_header_branch
                  %1190 = sbr.rel (%p1187) target = $region89
                $region86: #{tpu_custom_call.1} parent=81 // loop_body
                  %v1194 = vld [vmem:[%s1192] sm:$0xff]
                  %1195 = vst [vmem:[%s1193] sm:$0xff] %v1194
                  %v1196 = vld [vmem:[%s1192 + $0x8] sm:$0xff]
                  %1197 = vst [vmem:[%s1193 + $0x8] sm:$0xff] %v1196
                  %v1198 = vld [vmem:[%s1192 + $0x10] sm:$0xff]
                  %1199 = vst [vmem:[%s1193 + $0x10] sm:$0xff] %v1198
                  %v1200 = vld [vmem:[%s1192 + $0x18] sm:$0xff]
                  %1201 = vst [vmem:[%s1193 + $0x18] sm:$0xff] %v1200
                  %v1202 = vld [vmem:[%s1192 + $0x20] sm:$0xff]
                  %1203 = vst [vmem:[%s1193 + $0x20] sm:$0xff] %v1202
                  %v1204 = vld [vmem:[%s1192 + $0x28] sm:$0xff]
                  %1205 = vst [vmem:[%s1193 + $0x28] sm:$0xff] %v1204
                  %v1206 = vld [vmem:[%s1192 + $0x30] sm:$0xff]
                  %1207 = vst [vmem:[%s1193 + $0x30] sm:$0xff] %v1206
                  %v1208 = vld [vmem:[%s1192 + $0x38] sm:$0xff]
                  %1209 = vst [vmem:[%s1193 + $0x38] sm:$0xff] %v1208
                  %v1210 = vld [vmem:[%s1192 + $0x40] sm:$0xff]
                  %1211 = vst [vmem:[%s1193 + $0x40] sm:$0xff] %v1210
                  %v1212 = vld [vmem:[%s1192 + $0x48] sm:$0xff]
                  %1213 = vst [vmem:[%s1193 + $0x48] sm:$0xff] %v1212
                  %v1214 = vld [vmem:[%s1192 + $0x50] sm:$0xff]
                  %1215 = vst [vmem:[%s1193 + $0x50] sm:$0xff] %v1214
                  %v1216 = vld [vmem:[%s1192 + $0x58] sm:$0xff]
                  %1217 = vst [vmem:[%s1193 + $0x58] sm:$0xff] %v1216
                  %v1218 = vld [vmem:[%s1192 + $0x60] sm:$0xff]
                  %1219 = vst [vmem:[%s1193 + $0x60] sm:$0xff] %v1218
                  %v1220 = vld [vmem:[%s1192 + $0x68] sm:$0xff]
                  %1221 = vst [vmem:[%s1193 + $0x68] sm:$0xff] %v1220
                  %v1222 = vld [vmem:[%s1192 + $0x70] sm:$0xff]
                  %1223 = vst [vmem:[%s1193 + $0x70] sm:$0xff] %v1222
                  %v1224 = vld [vmem:[%s1192 + $0x78] sm:$0xff]
                  %1225 = vst [vmem:[%s1193 + $0x78] sm:$0xff] %v1224
                  %v1226 = vld [vmem:[%s1192 + $0x80] sm:$0xff]
                  %1227 = vst [vmem:[%s1193 + $0x80] sm:$0xff] %v1226
                  %v1228 = vld [vmem:[%s1192 + $0x88] sm:$0xff]
                  %1229 = vst [vmem:[%s1193 + $0x88] sm:$0xff] %v1228
                  %v1230 = vld [vmem:[%s1192 + $0x90] sm:$0xff]
                  %1231 = vst [vmem:[%s1193 + $0x90] sm:$0xff] %v1230
                  %v1232 = vld [vmem:[%s1192 + $0x98] sm:$0xff]
                  %1233 = vst [vmem:[%s1193 + $0x98] sm:$0xff] %v1232
                  %v1234 = vld [vmem:[%s1192 + $0xa0] sm:$0xff]
                  %1235 = vst [vmem:[%s1193 + $0xa0] sm:$0xff] %v1234
                  %v1236 = vld [vmem:[%s1192 + $0xa8] sm:$0xff]
                  %1237 = vst [vmem:[%s1193 + $0xa8] sm:$0xff] %v1236
                  %v1238 = vld [vmem:[%s1192 + $0xb0] sm:$0xff]
                  %1239 = vst [vmem:[%s1193 + $0xb0] sm:$0xff] %v1238
                  %v1240 = vld [vmem:[%s1192 + $0xb8] sm:$0xff]
                  %1241 = vst [vmem:[%s1193 + $0xb8] sm:$0xff] %v1240
                  %v1242 = vld [vmem:[%s1192 + $0xc0] sm:$0xff]
                  %1243 = vst [vmem:[%s1193 + $0xc0] sm:$0xff] %v1242
                  %v1244 = vld [vmem:[%s1192 + $0xc8] sm:$0xff]
                  %1245 = vst [vmem:[%s1193 + $0xc8] sm:$0xff] %v1244
                  %v1246 = vld [vmem:[%s1192 + $0xd0] sm:$0xff]
                  %1247 = vst [vmem:[%s1193 + $0xd0] sm:$0xff] %v1246
                  %v1248 = vld [vmem:[%s1192 + $0xd8] sm:$0xff]
                  %1249 = vst [vmem:[%s1193 + $0xd8] sm:$0xff] %v1248
                  %v1250 = vld [vmem:[%s1192 + $0xe0] sm:$0xff]
                  %1251 = vst [vmem:[%s1193 + $0xe0] sm:$0xff] %v1250
                  %v1252 = vld [vmem:[%s1192 + $0xe8] sm:$0xff]
                  %1253 = vst [vmem:[%s1193 + $0xe8] sm:$0xff] %v1252
                  %v1254 = vld [vmem:[%s1192 + $0xf0] sm:$0xff]
                  %1255 = vst [vmem:[%s1193 + $0xf0] sm:$0xff] %v1254
                  %v1256 = vld [vmem:[%s1192 + $0xf8] sm:$0xff]
                  %1257 = vst [vmem:[%s1193 + $0xf8] sm:$0xff] %v1256
                  %s1258 = sadd.s32 1, %s1191
                  %p1259 = scmp.ge.s32.totalorder %s1258, %s1184
                  %s1260 = scalar_select %p1259, 0, %s1258
                  %s1261 = smul.u32 %s1260, 256
                  %s1262 = smul.u32 %s1260, 256
                  %s1263 = scalar_lea.vmem %s1056, %s1261 [#allocation7]
                  %s1264 = scalar_lea.vmem %s1067, %s1262
                $region87: #{tpu_custom_call.1} parent=81 // loop_footer
                  %s1188 = sadd.s32 %s1186, 1
                $region88: #{tpu_custom_call.1} parent=81 // loop_footer_branch
                  %1185 = sbr.rel target = $region84
                $region89: #{tpu_custom_call.1} parent=81 // loop_exit
                  _
                %s1265 = sshrl.u32 %s1063, 5
                %s1266 = sand.u32 %s1063, 31
                %s1267 = smul.u32 %s1265, 32
                %s1268 = smul.u32 8, %s1267
                %s1269 = scalar_lea.vmem %s1056, %s1268 [#allocation7]
                %s1270 = smul.u32 8, %s1267
                %s1271 = scalar_lea.vmem %s1067, %s1270
                // While loop
                $region90: #{tpu_custom_call.1} parent=81 // loop_pre_header
                  _
                $region91: #{tpu_custom_call.1} parent=81 // loop_header
                  %s1273 = sphi 0, %s1275
                  %p1274 = scmp.ge.s32.totalorder %s1273, %s1266
                  %s1278 = sphi 0, %s1285
                  %s1279 = sphi %s1269, %s1288
                  %s1280 = sphi %s1271, %s1289
                $region92: #{tpu_custom_call.1} parent=81 // loop_header_branch
                  %1277 = sbr.rel (%p1274) target = $region96
                $region93: #{tpu_custom_call.1} parent=81 // loop_body
                  %v1281 = vld [vmem:[%s1279] sm:$0xff]
                  %1282 = vst [vmem:[%s1280] sm:$0xff] %v1281
                  %s1283 = sadd.s32 1, %s1278
                  %p1284 = scmp.ge.s32.totalorder %s1283, %s1266
                  %s1285 = scalar_select %p1284, 0, %s1283
                  %s1286 = smul.u32 %s1285, 8
                  %s1287 = smul.u32 %s1285, 8
                  %s1288 = scalar_lea.vmem %s1269, %s1286 [#allocation7]
                  %s1289 = scalar_lea.vmem %s1271, %s1287
                $region94: #{tpu_custom_call.1} parent=81 // loop_footer
                  %s1275 = sadd.s32 %s1273, 1
                $region95: #{tpu_custom_call.1} parent=81 // loop_footer_branch
                  %1272 = sbr.rel target = $region91
                $region96: #{tpu_custom_call.1} parent=81 // loop_exit
                  _
              $region82: #{tpu_custom_call.1} parent=59 // pred_fallthru
                _
              // Predicated region
              $region97: #{tpu_custom_call.1} parent=59 // pred_check
                _
              $region98: #{tpu_custom_call.1} parent=59 // pred_check_branch
                %1291 = sbr.rel target = $region100
              $region99: #{tpu_custom_call.1} parent=59 // pred_region
                _
              $region100: #{tpu_custom_call.1} parent=59 // pred_fallthru
                _
            $region60: #{tpu_custom_call.1} parent=55 // pred_fallthru
              _
            // Predicated region
            $region61: #{tpu_custom_call.1} parent=55 // pred_check
              _
            $region62: #{tpu_custom_call.1} parent=55 // pred_check_branch
              %1074 = sbr.rel target = $region64
            $region63: #{tpu_custom_call.1} parent=55 // pred_region
              %s1076 = sshrl.u32 %s1063, 5
              // While loop
              $region65: #{tpu_custom_call.1} parent=63 // loop_pre_header
                _
              $region66: #{tpu_custom_call.1} parent=63 // loop_header
                %s1078 = sphi 0, %s1080
                %p1079 = scmp.ge.s32.totalorder %s1078, %s1076
                %s1083 = sphi 0, %s1152
                %s1084 = sphi %s1056, %s1155
                %s1085 = sphi %s1067, %s1156
              $region67: #{tpu_custom_call.1} parent=63 // loop_header_branch
                %1082 = sbr.rel (%p1079) target = $region71
              $region68: #{tpu_custom_call.1} parent=63 // loop_body
                %v1086 = vld [vmem:[%s1084] sm:$0xff]
                %1087 = vst [vmem:[%s1085] sm:$0xff] %v1086
                %v1088 = vld [vmem:[%s1084 + $0x8] sm:$0xff]
                %1089 = vst [vmem:[%s1085 + $0x8] sm:$0xff] %v1088
                %v1090 = vld [vmem:[%s1084 + $0x10] sm:$0xff]
                %1091 = vst [vmem:[%s1085 + $0x10] sm:$0xff] %v1090
                %v1092 = vld [vmem:[%s1084 + $0x18] sm:$0xff]
                %1093 = vst [vmem:[%s1085 + $0x18] sm:$0xff] %v1092
                %v1094 = vld [vmem:[%s1084 + $0x20] sm:$0xff]
                %1095 = vst [vmem:[%s1085 + $0x20] sm:$0xff] %v1094
                %v1096 = vld [vmem:[%s1084 + $0x28] sm:$0xff]
                %1097 = vst [vmem:[%s1085 + $0x28] sm:$0xff] %v1096
                %v1098 = vld [vmem:[%s1084 + $0x30] sm:$0xff]
                %1099 = vst [vmem:[%s1085 + $0x30] sm:$0xff] %v1098
                %v1100 = vld [vmem:[%s1084 + $0x38] sm:$0xff]
                %1101 = vst [vmem:[%s1085 + $0x38] sm:$0xff] %v1100
                %v1102 = vld [vmem:[%s1084 + $0x40] sm:$0xff]
                %1103 = vst [vmem:[%s1085 + $0x40] sm:$0xff] %v1102
                %v1104 = vld [vmem:[%s1084 + $0x48] sm:$0xff]
                %1105 = vst [vmem:[%s1085 + $0x48] sm:$0xff] %v1104
                %v1106 = vld [vmem:[%s1084 + $0x50] sm:$0xff]
                %1107 = vst [vmem:[%s1085 + $0x50] sm:$0xff] %v1106
                %v1108 = vld [vmem:[%s1084 + $0x58] sm:$0xff]
                %1109 = vst [vmem:[%s1085 + $0x58] sm:$0xff] %v1108
                %v1110 = vld [vmem:[%s1084 + $0x60] sm:$0xff]
                %1111 = vst [vmem:[%s1085 + $0x60] sm:$0xff] %v1110
                %v1112 = vld [vmem:[%s1084 + $0x68] sm:$0xff]
                %1113 = vst [vmem:[%s1085 + $0x68] sm:$0xff] %v1112
                %v1114 = vld [vmem:[%s1084 + $0x70] sm:$0xff]
                %1115 = vst [vmem:[%s1085 + $0x70] sm:$0xff] %v1114
                %v1116 = vld [vmem:[%s1084 + $0x78] sm:$0xff]
                %1117 = vst [vmem:[%s1085 + $0x78] sm:$0xff] %v1116
                %v1118 = vld [vmem:[%s1084 + $0x80] sm:$0xff]
                %1119 = vst [vmem:[%s1085 + $0x80] sm:$0xff] %v1118
                %v1120 = vld [vmem:[%s1084 + $0x88] sm:$0xff]
                %1121 = vst [vmem:[%s1085 + $0x88] sm:$0xff] %v1120
                %v1122 = vld [vmem:[%s1084 + $0x90] sm:$0xff]
                %1123 = vst [vmem:[%s1085 + $0x90] sm:$0xff] %v1122
                %v1124 = vld [vmem:[%s1084 + $0x98] sm:$0xff]
                %1125 = vst [vmem:[%s1085 + $0x98] sm:$0xff] %v1124
                %v1126 = vld [vmem:[%s1084 + $0xa0] sm:$0xff]
                %1127 = vst [vmem:[%s1085 + $0xa0] sm:$0xff] %v1126
                %v1128 = vld [vmem:[%s1084 + $0xa8] sm:$0xff]
                %1129 = vst [vmem:[%s1085 + $0xa8] sm:$0xff] %v1128
                %v1130 = vld [vmem:[%s1084 + $0xb0] sm:$0xff]
                %1131 = vst [vmem:[%s1085 + $0xb0] sm:$0xff] %v1130
                %v1132 = vld [vmem:[%s1084 + $0xb8] sm:$0xff]
                %1133 = vst [vmem:[%s1085 + $0xb8] sm:$0xff] %v1132
                %v1134 = vld [vmem:[%s1084 + $0xc0] sm:$0xff]
                %1135 = vst [vmem:[%s1085 + $0xc0] sm:$0xff] %v1134
                %v1136 = vld [vmem:[%s1084 + $0xc8] sm:$0xff]
                %1137 = vst [vmem:[%s1085 + $0xc8] sm:$0xff] %v1136
                %v1138 = vld [vmem:[%s1084 + $0xd0] sm:$0xff]
                %1139 = vst [vmem:[%s1085 + $0xd0] sm:$0xff] %v1138
                %v1140 = vld [vmem:[%s1084 + $0xd8] sm:$0xff]
                %1141 = vst [vmem:[%s1085 + $0xd8] sm:$0xff] %v1140
                %v1142 = vld [vmem:[%s1084 + $0xe0] sm:$0xff]
                %1143 = vst [vmem:[%s1085 + $0xe0] sm:$0xff] %v1142
                %v1144 = vld [vmem:[%s1084 + $0xe8] sm:$0xff]
                %1145 = vst [vmem:[%s1085 + $0xe8] sm:$0xff] %v1144
                %v1146 = vld [vmem:[%s1084 + $0xf0] sm:$0xff]
                %1147 = vst [vmem:[%s1085 + $0xf0] sm:$0xff] %v1146
                %v1148 = vld [vmem:[%s1084 + $0xf8] sm:$0xff]
                %1149 = vst [vmem:[%s1085 + $0xf8] sm:$0xff] %v1148
                %s1150 = sadd.s32 1, %s1083
                %p1151 = scmp.ge.s32.totalorder %s1150, %s1076
                %s1152 = scalar_select %p1151, 0, %s1150
                %s1153 = smul.u32 %s1152, 256
                %s1154 = smul.u32 %s1152, 256
                %s1155 = scalar_lea.vmem %s1056, %s1153 [#allocation7]
                %s1156 = scalar_lea.vmem %s1067, %s1154
              $region69: #{tpu_custom_call.1} parent=63 // loop_footer
                %s1080 = sadd.s32 %s1078, 1
              $region70: #{tpu_custom_call.1} parent=63 // loop_footer_branch
                %1077 = sbr.rel target = $region66
              $region71: #{tpu_custom_call.1} parent=63 // loop_exit
                _
              %s1157 = sshrl.u32 %s1063, 5
              %s1158 = sand.u32 %s1063, 31
              %s1159 = smul.u32 %s1157, 32
              %s1160 = smul.u32 8, %s1159
              %s1161 = scalar_lea.vmem %s1056, %s1160 [#allocation7]
              %s1162 = smul.u32 8, %s1159
              %s1163 = scalar_lea.vmem %s1067, %s1162
              // While loop
              $region72: #{tpu_custom_call.1} parent=63 // loop_pre_header
                _
              $region73: #{tpu_custom_call.1} parent=63 // loop_header
                %s1165 = sphi 0, %s1167
                %p1166 = scmp.ge.s32.totalorder %s1165, %s1158
                %s1170 = sphi 0, %s1177
                %s1171 = sphi %s1161, %s1180
                %s1172 = sphi %s1163, %s1181
              $region74: #{tpu_custom_call.1} parent=63 // loop_header_branch
                %1169 = sbr.rel (%p1166) target = $region78
              $region75: #{tpu_custom_call.1} parent=63 // loop_body
                %v1173 = vld [vmem:[%s1171] sm:$0xff]
                %1174 = vst [vmem:[%s1172] sm:$0xff] %v1173
                %s1175 = sadd.s32 1, %s1170
                %p1176 = scmp.ge.s32.totalorder %s1175, %s1158
                %s1177 = scalar_select %p1176, 0, %s1175
                %s1178 = smul.u32 %s1177, 8
                %s1179 = smul.u32 %s1177, 8
                %s1180 = scalar_lea.vmem %s1161, %s1178 [#allocation7]
                %s1181 = scalar_lea.vmem %s1163, %s1179
              $region76: #{tpu_custom_call.1} parent=63 // loop_footer
                %s1167 = sadd.s32 %s1165, 1
              $region77: #{tpu_custom_call.1} parent=63 // loop_footer_branch
                %1164 = sbr.rel target = $region73
              $region78: #{tpu_custom_call.1} parent=63 // loop_exit
                _
            $region64: #{tpu_custom_call.1} parent=55 // pred_fallthru
              _
          $region56: #{tpu_custom_call.1} parent=51 // pred_fallthru
            _
          %1292 = vnop
        $region52: #{tpu_custom_call.1} parent=39 // pred_fallthru
          _
      $region40: #{tpu_custom_call.1} parent=5 // pred_fallthru
        _
      %p1293 = scmp.le.s32.totalorder 2, %s17
      // Predicated region
      $region101: #{tpu_custom_call.1} parent=5 // pred_check
        %p1294 = pneg %p1293
      $region102: #{tpu_custom_call.1} parent=5 // pred_check_branch
        %1296 = sbr.rel (%p1294) target = $region104
      $region103: #{tpu_custom_call.1} parent=5 // pred_region
        %s1297 = ssub.s32 %s17, 2
        // Predicated region
        $region105: #{tpu_custom_call.1} parent=103 // pred_check
          %p1298 = pneg %p156
        $region106: #{tpu_custom_call.1} parent=103 // pred_check_branch
          %1300 = sbr.rel (%p1298) target = $region108
        $region107: #{tpu_custom_call.1} parent=103 // pred_region
          %s1301 = sand.u32 %s141, 1
          %s1302 = sand.u32 %s141, 1
          %s1303 = smul.addr %s1302, 256
          %s1304 = scalar_lea.vmem [#allocation7], %s1303
        $region108: #{tpu_custom_call.1} parent=103 // pred_fallthru
          _
      $region104: #{tpu_custom_call.1} parent=5 // pred_fallthru
        _
    $region6: #{tpu_custom_call.1} parent=1 // loop_footer
      %s21 = sadd.s32 1, %s17
    $region7: #{tpu_custom_call.1} parent=1 // loop_footer_branch
      %16 = sbr.rel target = $region3
    $region8: #{tpu_custom_call.1} parent=1 // loop_exit
      _
    %1305 = vsyncpa [#allocation4], 1
    %s1306 = scalar_lea.sflag [#allocation4], 1
    %1307 = vsyncpa %s1306, 1
    %1308 = vsyncpa [#allocation6], 1

</llo_original>
